<compile_context>
chip_gen: v5e
topology: v5e:2x2
jax: 0.10.0
libtpu: 0.0.40
codegen_flags: <defaults>
</compile_context>

<pallas_src>
import functools
import math

import jax
import jax.numpy as jnp
from jax.experimental import pallas as pl
from jax.experimental.pallas import tpu as pltpu


def _finalize(acc, xs, ws, lbl, o_ref, *, is_am, margin, mv_weight, scale,
              cos_m, sin_m):
    """Turn the fused accumulators into the MV-Softmax logits and store them."""
    eps = 1e-12
    x_norm = jnp.maximum(jnp.sqrt(xs), eps)          # (tm, 1)
    w_norm = jnp.maximum(jnp.sqrt(ws), eps)          # (1, C)
    cos_theta = acc / (x_norm * w_norm)              # (tm, C)

    col_ids = jax.lax.broadcasted_iota(jnp.int32, cos_theta.shape, 1)
    is_label = col_ids == lbl                        # (tm, C), lbl is (tm, 1) int32
    gt = jnp.sum(jnp.where(is_label, cos_theta, 0.0), axis=1, keepdims=True)

    if is_am:
        mask = cos_theta > gt - margin
        final_gt = jnp.where(gt > margin, gt - margin, gt)
    else:
        sin_theta = jnp.sqrt(jnp.maximum(1.0 - gt * gt, 0.0))
        cos_theta_m = gt * cos_m - sin_theta * sin_m
        mask = cos_theta > cos_theta_m
        final_gt = jnp.where(gt > 0.0, cos_theta_m, gt)

    hard = mv_weight * cos_theta + (mv_weight - 1.0)
    out = jnp.where(mask, hard, cos_theta)
    out = jnp.where(is_label, final_gt, out)         # scatter_ overrides mask at label col
    o_ref[...] = (out * scale).astype(o_ref.dtype)


def _mv_softmax_kernel_single(x_ref, w_ref, lbl_ref, o_ref, **static):
    """Full-K-in-one-tile path: no accumulator scratch, no zero-init."""
    x = x_ref[...]
    w = w_ref[...]
    acc = jnp.dot(x, w, preferred_element_type=jnp.float32)
    xs = jnp.sum(x * x, axis=1, keepdims=True)
    ws = jnp.sum(w * w, axis=0, keepdims=True)
    _finalize(acc, xs, ws, lbl_ref[...], o_ref, **static)


def _mv_softmax_kernel_multi(x_ref, w_ref, lbl_ref, o_ref,
                             acc_ref, xs_ref, ws_ref, **static):
    """General path: reduce over the K grid axis into VMEM scratch."""
    k = pl.program_id(1)

    @pl.when(k == 0)
    def _():
        acc_ref[...] = jnp.zeros_like(acc_ref)
        xs_ref[...] = jnp.zeros_like(xs_ref)
        ws_ref[...] = jnp.zeros_like(ws_ref)

    x = x_ref[...]
    w = w_ref[...]
    acc_ref[...] += jnp.dot(x, w, preferred_element_type=jnp.float32)
    xs_ref[...] += jnp.sum(x * x, axis=1, keepdims=True)
    ws_ref[...] += jnp.sum(w * w, axis=0, keepdims=True)

    @pl.when(k == pl.num_programs(1) - 1)
    def _():
        _finalize(acc_ref[...], xs_ref[...], ws_ref[...], lbl_ref[...], o_ref,
                  **static)


def mv_softmax_forward(x, weight, label, *, is_am, margin=0.35, mv_weight=1.12,
                       scale=32.0, tm=128, tk=512):
    """MV_Softmax.forward.

    x:      (M, K)  float32   (batch, feat_dim)
    weight: (K, C)  float32   (feat_dim, num_class) -- PyTorch layout of this module
    label:  (M,)    int32
    """
    M, K = x.shape
    K2, C = weight.shape
    assert K == K2, "feat_dim mismatch"
    assert label.shape == (M,)

    tm = min(tm, M)
    tk = min(tk, K)
    assert M % tm == 0, "batch must be a multiple of tm (pad externally)"
    assert K % tk == 0, "feat_dim must be a multiple of tk (pad externally)"
    assert tm == M or tm % 8 == 0
    assert tk == K or tk % 128 == 0

    lbl2 = label.reshape(M, 1).astype(jnp.int32)

    static = dict(is_am=bool(is_am), margin=float(margin),
                  mv_weight=float(mv_weight), scale=float(scale),
                  cos_m=math.cos(margin), sin_m=math.sin(margin))

    cost = pl.CostEstimate(
        flops=2 * M * K * C + 8 * M * C,
        transcendentals=2 * M + C,
        bytes_accessed=4 * (M * K + K * C + M * C + M),
    )
    cparams_common = dict()

    if tk == K:
        kernel = functools.partial(_mv_softmax_kernel_single, **static)
        grid = (M // tm,)
        return pl.pallas_call(
            kernel,
            out_shape=jax.ShapeDtypeStruct((M, C), x.dtype),
            grid_spec=pltpu.PrefetchScalarGridSpec(
                num_scalar_prefetch=0,
                grid=grid,
                in_specs=[
                    pl.BlockSpec((tm, K), lambda i: (i, 0)),   # x rows
                    pl.BlockSpec((K, C), lambda i: (0, 0)),    # full weight (resident)
                    pl.BlockSpec((tm, 1), lambda i: (i, 0)),   # labels
                ],
                out_specs=pl.BlockSpec((tm, C), lambda i: (i, 0)),
            ),
            compiler_params=pltpu.CompilerParams(
                dimension_semantics=("parallel",), **cparams_common),
            cost_estimate=cost,
        )(x, weight, lbl2)

    kernel = functools.partial(_mv_softmax_kernel_multi, **static)
    grid = (M // tm, K // tk)
    return pl.pallas_call(
        kernel,
        out_shape=jax.ShapeDtypeStruct((M, C), x.dtype),
        grid_spec=pltpu.PrefetchScalarGridSpec(
            num_scalar_prefetch=0,
            grid=grid,
            in_specs=[
                pl.BlockSpec((tm, tk), lambda i, k: (i, k)),   # x tile
                pl.BlockSpec((tk, C), lambda i, k: (k, 0)),    # weight tile
                pl.BlockSpec((tm, 1), lambda i, k: (i, 0)),    # labels (const in k)
            ],
            out_specs=pl.BlockSpec((tm, C), lambda i, k: (i, 0)),
            scratch_shapes=[
                pltpu.VMEM((tm, C), jnp.float32),   # matmul accumulator
                pltpu.VMEM((tm, 1), jnp.float32),   # sum(x^2) per row
                pltpu.VMEM((1, C), jnp.float32),    # sum(w^2) per column
            ],
        ),
        compiler_params=pltpu.CompilerParams(
            dimension_semantics=("parallel", "arbitrary"), **cparams_common),
        cost_estimate=cost,
    )(x, weight, lbl2)


def mv_softmax_ref(x, weight, label, *, is_am, margin=0.35, mv_weight=1.12,
                   scale=32.0):
    """Plain-JAX reference matching the PyTorch module."""
    cos_m, sin_m = math.cos(margin), math.sin(margin)
    eps = 1e-12
    w_n = weight / jnp.maximum(jnp.linalg.norm(weight, axis=0, keepdims=True), eps)
    x_n = x / jnp.maximum(jnp.linalg.norm(x, axis=1, keepdims=True), eps)
    cos_theta = x_n @ w_n
    gt = cos_theta[jnp.arange(x.shape[0]), label][:, None]
    if is_am:
        mask = cos_theta > gt - margin
        final_gt = jnp.where(gt > margin, gt - margin, gt)
    else:
        sin_theta = jnp.sqrt(jnp.maximum(1.0 - gt * gt, 0.0))
        cos_theta_m = gt * cos_m - sin_theta * sin_m
        mask = cos_theta > cos_theta_m
        final_gt = jnp.where(gt > 0.0, cos_theta_m, gt)
    out = jnp.where(mask, mv_weight * cos_theta + (mv_weight - 1.0), cos_theta)
    col = jax.lax.broadcasted_iota(jnp.int32, cos_theta.shape, 1)
    out = jnp.where(col == label[:, None], final_gt, out)
    return out * scale


if __name__ == "__main__":
    batch, feat_dim, num_class = 32, 128, 256

    key = jax.random.PRNGKey(0)
    kx, kw, kl = jax.random.split(key, 3)

    x = jax.random.normal(kx, (batch, feat_dim), dtype=jnp.float32)
    # module init is uniform(-1,1) then column-renorm; the forward re-normalizes
    # columns anyway, so plain uniform weights are an equivalent test input.
    weight = jax.random.uniform(kw, (feat_dim, num_class), dtype=jnp.float32,
                                minval=-1.0, maxval=1.0)
    label = jax.random.randint(kl, (batch,), 0, num_class, dtype=jnp.int32)

    for is_am in (True, False):
        out = mv_softmax_forward(x, weight, label, is_am=is_am)
        out = jax.block_until_ready(out)
        ref = mv_softmax_ref(x, weight, label, is_am=is_am)
        assert out.shape == (batch, num_class)
        assert jnp.allclose(out, ref, atol=2e-4, rtol=2e-4), f"mismatch is_am={is_am}"

    print("KERNEL_OK")
</pallas_src>

<mosaic_0001>
module attributes {stable_mosaic.version = 11 : i64} {
  func.func @_mv_softmax_kernel_single(%arg0: i32, %arg1: memref<32x128xf32, #tpu.memory_space<vmem>>, %arg2: memref<128x256xf32, #tpu.memory_space<vmem>>, %arg3: memref<32x1xi32, #tpu.memory_space<vmem>>, %arg4: memref<32x256xf32, #tpu.memory_space<vmem>>) attributes {dimension_semantics = [#tpu.dimension_semantics<parallel>], iteration_bounds = array<i64: 1>, scalar_prefetch = 0 : i64, scratch_operands = 0 : i64, tpu.core_type = #tpu.core_type<tc>, window_params = [{transform_indices = @transform_0, window_bounds = array<i64: 32, 128>}, {pipeline_mode = #tpu.pipeline_mode<synchronous>, transform_indices = @transform_1, window_bounds = array<i64: 128, 256>}, {transform_indices = @transform_2, window_bounds = array<i64: 32, 1>}, {transform_indices = @transform_3, window_bounds = array<i64: 32, 256>}]} {
    %c0 = arith.constant 0 : index
    %c0_0 = arith.constant 0 : index
    %0 = vector.load %arg1[%c0, %c0_0] : memref<32x128xf32, #tpu.memory_space<vmem>>, vector<32x128xf32>
    %c0_1 = arith.constant 0 : index
    %c0_2 = arith.constant 0 : index
    %1 = vector.load %arg2[%c0_1, %c0_2] : memref<128x256xf32, #tpu.memory_space<vmem>>, vector<128x256xf32>
    %cst = arith.constant dense<0.000000e+00> : vector<32x256xf32>
    %2 = tpu.matmul %0, %1, %cst {dimension_numbers = #tpu.dot_dimension_numbers<[1], [0], [0], [1], [0, 0, 1, 1], [], []>} : vector<32x128xf32>, vector<128x256xf32>, vector<32x256xf32> -> vector<32x256xf32>
    %3 = arith.mulf %0, %0 : vector<32x128xf32>
    %cst_3 = arith.constant dense<0.000000e+00> : vector<32xf32>
    %4 = vector.multi_reduction <add>, %3, %cst_3 [1] : vector<32x128xf32> to vector<32xf32>
    %5 = vector.shape_cast %4 : vector<32xf32> to vector<32x1xf32>
    %6 = arith.mulf %1, %1 : vector<128x256xf32>
    %cst_4 = arith.constant dense<0.000000e+00> : vector<256xf32>
    %7 = vector.multi_reduction <add>, %6, %cst_4 [0] : vector<128x256xf32> to vector<256xf32>
    %8 = vector.shape_cast %7 : vector<256xf32> to vector<1x256xf32>
    %c0_5 = arith.constant 0 : index
    %c0_6 = arith.constant 0 : index
    %9 = vector.load %arg3[%c0_5, %c0_6] : memref<32x1xi32, #tpu.memory_space<vmem>>, vector<32x1xi32>
    %10 = math.sqrt %5 : vector<32x1xf32>
    %cst_7 = arith.constant 9.99999996E-13 : f32
    %11 = vector.broadcast %cst_7 : f32 to vector<32x1xf32>
    %12 = arith.maximumf %10, %11 : vector<32x1xf32>
    %13 = math.sqrt %8 : vector<1x256xf32>
    %cst_8 = arith.constant 9.99999996E-13 : f32
    %14 = vector.broadcast %cst_8 : f32 to vector<1x256xf32>
    %15 = arith.maximumf %13, %14 : vector<1x256xf32>
    %16 = vector.broadcast %12 : vector<32x1xf32> to vector<32x256xf32>
    %17 = vector.broadcast %15 : vector<1x256xf32> to vector<32x256xf32>
    %18 = arith.mulf %16, %17 : vector<32x256xf32>
    %19 = arith.divf %2, %18 : vector<32x256xf32>
    %20 = tpu.iota {dimensions = array<i32: 1>} : vector<32x256xi32>
    %21 = vector.broadcast %9 : vector<32x1xi32> to vector<32x256xi32>
    %22 = arith.cmpi eq, %20, %21 : vector<32x256xi32>
    %cst_9 = arith.constant 0.000000e+00 : f32
    %23 = vector.broadcast %cst_9 : f32 to vector<32x256xf32>
    %24 = arith.select %22, %19, %23 : vector<32x256xi1>, vector<32x256xf32>
    %cst_10 = arith.constant dense<0.000000e+00> : vector<32xf32>
    %25 = vector.multi_reduction <add>, %24, %cst_10 [1] : vector<32x256xf32> to vector<32xf32>
    %26 = vector.shape_cast %25 : vector<32xf32> to vector<32x1xf32>
    %cst_11 = arith.constant 3.500000e-01 : f32
    %27 = vector.broadcast %cst_11 : f32 to vector<32x1xf32>
    %28 = arith.subf %26, %27 : vector<32x1xf32>
    %29 = vector.broadcast %28 : vector<32x1xf32> to vector<32x256xf32>
    %30 = arith.cmpf ogt, %19, %29 : vector<32x256xf32>
    %cst_12 = arith.constant 3.500000e-01 : f32
    %31 = vector.broadcast %cst_12 : f32 to vector<32x1xf32>
    %32 = arith.cmpf ogt, %26, %31 : vector<32x1xf32>
    %cst_13 = arith.constant 3.500000e-01 : f32
    %33 = vector.broadcast %cst_13 : f32 to vector<32x1xf32>
    %34 = arith.subf %26, %33 : vector<32x1xf32>
    %35 = arith.select %32, %34, %26 : vector<32x1xi1>, vector<32x1xf32>
    %cst_14 = arith.constant 1.120000e+00 : f32
    %36 = vector.broadcast %cst_14 : f32 to vector<32x256xf32>
    %37 = arith.mulf %36, %19 : vector<32x256xf32>
    %cst_15 = arith.constant 1.200000e-01 : f32
    %38 = vector.broadcast %cst_15 : f32 to vector<32x256xf32>
    %39 = arith.addf %37, %38 : vector<32x256xf32>
    %40 = arith.select %30, %39, %19 : vector<32x256xi1>, vector<32x256xf32>
    %41 = vector.shape_cast %35 : vector<32x1xf32> to vector<32x1xf32>
    %42 = vector.broadcast %41 : vector<32x1xf32> to vector<32x256xf32>
    %43 = arith.select %22, %42, %40 : vector<32x256xi1>, vector<32x256xf32>
    %cst_16 = arith.constant 3.200000e+01 : f32
    %44 = vector.broadcast %cst_16 : f32 to vector<32x256xf32>
    %45 = arith.mulf %43, %44 : vector<32x256xf32>
    %c0_17 = arith.constant 0 : index
    %c0_18 = arith.constant 0 : index
    %46 = vector.load %arg4[%c0_17, %c0_18] : memref<32x256xf32, #tpu.memory_space<vmem>>, vector<32x256xf32>
    tpu.vector_store %arg4[%c0_17, %c0_18], %45 {strides = array<i32>} : memref<32x256xf32, #tpu.memory_space<vmem>>, vector<32x256xf32>,
    return
  }
  func.func @transform_0(%arg0: i32) -> (i32, i32) {
    %c0_i32 = arith.constant 0 : i32
    %c0_i32_0 = arith.constant 0 : i32
    return %arg0, %c0_i32 : i32, i32
  }
  func.func @transform_1(%arg0: i32) -> (i32, i32) {
    %c0_i32 = arith.constant 0 : i32
    %c0_i32_0 = arith.constant 0 : i32
    %c0_i32_1 = arith.constant 0 : i32
    return %c0_i32, %c0_i32_0 : i32, i32
  }
  func.func @transform_2(%arg0: i32) -> (i32, i32) {
    %c0_i32 = arith.constant 0 : i32
    %c0_i32_0 = arith.constant 0 : i32
    return %arg0, %c0_i32 : i32, i32
  }
  func.func @transform_3(%arg0: i32) -> (i32, i32) {
    %c0_i32 = arith.constant 0 : i32
    %c0_i32_0 = arith.constant 0 : i32
    return %arg0, %c0_i32 : i32, i32
  }
}

</mosaic_0001>

<llo_original>
// kernel: tpu_custom_call.1
$region0: #{tpu_custom_call.1}
  #allocation0 [shape = 'u32[]', space=smem, size = 0x4, offset = 0x4, fixed_abs, tag = 'smem constant byte address 0x4 - core index']
  #allocation1 [shape = 'u32[72,128]{1,0:T(1,128)}', space=vmem, size = 0x9000, scoped, tag = 'internal scratch']
  %s0 = inlined_call_operand.vmem [shape: f32[32,128], index: 0, kind: input, shape index: {}]
  %s1 = inlined_call_operand.hbm [shape: f32[128,256], index: 1, kind: input, shape index: {}]
  %s2 = inlined_call_operand.vmem [shape: s32[32,1], index: 2, kind: input, shape index: {}]
  %s3 = inlined_call_operand.hbm [shape: f32[32,256], index: 3, kind: output, shape index: {}]
  %s4 = sld [smem:[#allocation0]]
  $region26: #{tpu_custom_call.1} parent=0
    _
  %s6 = ssub.s32 1, %s4
  %s7 = scalar_select 0, %s6, %s4
  $region1: #{tpu_custom_call.1} parent=0
    #allocation2 [shape = 'u8[131072]{0}', space=vmem, size = 0x20000, scoped, tag = 'input window, operand 1, single buffered']
    #allocation3 [shape = 's32[1]{0}', space=sflag, size = 0x4, scoped, tag = 'scoped memory for tpu_custom_call.1']
    #allocation4 [shape = 's32[1]{0}', space=sflag, size = 0x4, scoped, tag = 'scoped memory for tpu_custom_call.1']
    #allocation5 [shape = 'u8[32768]{0}', space=vmem, size = 0x8000, scoped, tag = 'output window, operand 0, single buffered']
    %8 = vsyncpa [#allocation3], 0
    %9 = vsyncpa [#allocation4], 0
    // Predicated region
    $region2: #{tpu_custom_call.1} parent=1 // pred_check
      _
    $region3: #{tpu_custom_call.1} parent=1 // pred_check_branch
      %11 = sbr.rel (0) target = $region5
    $region4: #{tpu_custom_call.1} parent=1 // pred_region
      _
    $region5: #{tpu_custom_call.1} parent=1 // pred_fallthru
      _
    // Predicated region
    $region6: #{tpu_custom_call.1} parent=1 // pred_check
      _
    $region7: #{tpu_custom_call.1} parent=1 // pred_check_branch
      %13 = sbr.rel (0) target = $region9
    $region8: #{tpu_custom_call.1} parent=1 // pred_region
      %15 = vsyncadd [#allocation3], 0
      %s16 = sshll.u32 %s1, 4
      %s17 = int_to_ptr.hbm [resolvable:$true] %s16
      %s18 = sshll.u32 [#allocation2], 4
      %s19 = int_to_ptr.vmem [resolvable:$true] %s18
      %24 = dma.hbm_to_vmem [thread:$0]  %s17, 4096, %s19, [#allocation3], 256, 256, 16
    $region9: #{tpu_custom_call.1} parent=1 // pred_fallthru
      _
    // Predicated region
    $region10: #{tpu_custom_call.1} parent=1 // pred_check
      _
    $region11: #{tpu_custom_call.1} parent=1 // pred_check_branch
      %26 = sbr.rel (0) target = $region13
    $region12: #{tpu_custom_call.1} parent=1 // pred_region
      _
    $region13: #{tpu_custom_call.1} parent=1 // pred_fallthru
      _
    // Predicated region
    $region14: #{tpu_custom_call.1} parent=1 // pred_check
      _
    $region15: #{tpu_custom_call.1} parent=1 // pred_check_branch
      %28 = sbr.rel (0) target = $region17
    $region16: #{tpu_custom_call.1} parent=1 // pred_region
      %30 = dma.done [#allocation3], 4096
    $region17: #{tpu_custom_call.1} parent=1 // pred_fallthru
      _
    %v31 = vld [vmem:[%s0] sm:$0xff]
    %v32 = vld [vmem:[%s0 + $0x8] sm:$0xff]
    %v33 = vld [vmem:[%s0 + $0x10] sm:$0xff]
    %v34 = vld [vmem:[%s0 + $0x18] sm:$0xff]
    %v35 = vld [vmem:[#allocation2] sm:$0xff]
    %v36 = vld [vmem:[#allocation2 + $0x8] sm:$0xff]
    %v37 = vld [vmem:[#allocation2 + $0x10] sm:$0xff]
    %v38 = vld [vmem:[#allocation2 + $0x18] sm:$0xff]
    %v39 = vld [vmem:[#allocation2 + $0x20] sm:$0xff]
    %v40 = vld [vmem:[#allocation2 + $0x28] sm:$0xff]
    %v41 = vld [vmem:[#allocation2 + $0x30] sm:$0xff]
    %v42 = vld [vmem:[#allocation2 + $0x38] sm:$0xff]
    %v43 = vld [vmem:[#allocation2 + $0x40] sm:$0xff]
    %v44 = vld [vmem:[#allocation2 + $0x48] sm:$0xff]
    %v45 = vld [vmem:[#allocation2 + $0x50] sm:$0xff]
    %v46 = vld [vmem:[#allocation2 + $0x58] sm:$0xff]
    %v47 = vld [vmem:[#allocation2 + $0x60] sm:$0xff]
    %v48 = vld [vmem:[#allocation2 + $0x68] sm:$0xff]
    %v49 = vld [vmem:[#allocation2 + $0x70] sm:$0xff]
    %v50 = vld [vmem:[#allocation2 + $0x78] sm:$0xff]
    %v51 = vld [vmem:[#allocation2 + $0x80] sm:$0xff]
    %v52 = vld [vmem:[#allocation2 + $0x88] sm:$0xff]
    %v53 = vld [vmem:[#allocation2 + $0x90] sm:$0xff]
    %v54 = vld [vmem:[#allocation2 + $0x98] sm:$0xff]
    %v55 = vld [vmem:[#allocation2 + $0xa0] sm:$0xff]
    %v56 = vld [vmem:[#allocation2 + $0xa8] sm:$0xff]
    %v57 = vld [vmem:[#allocation2 + $0xb0] sm:$0xff]
    %v58 = vld [vmem:[#allocation2 + $0xb8] sm:$0xff]
    %v59 = vld [vmem:[#allocation2 + $0xc0] sm:$0xff]
    %v60 = vld [vmem:[#allocation2 + $0xc8] sm:$0xff]
    %v61 = vld [vmem:[#allocation2 + $0xd0] sm:$0xff]
    %v62 = vld [vmem:[#allocation2 + $0xd8] sm:$0xff]
    %v63 = vld [vmem:[#allocation2 + $0xe0] sm:$0xff]
    %v64 = vld [vmem:[#allocation2 + $0xe8] sm:$0xff]
    %v65 = vld [vmem:[#allocation2 + $0xf0] sm:$0xff]
    %v66 = vld [vmem:[#allocation2 + $0xf8] sm:$0xff]
    %67 = vmatpush.msra.mxu0 %v65
    %68 = vmatpush.msra.mxu0 %v63
    %69 = vmatpush.msra.mxu0 %v61
    %70 = vmatpush.msra.mxu0 %v59
    %71 = vmatpush.msra.mxu0 %v57
    %72 = vmatpush.msra.mxu0 %v55
    %73 = vmatpush.msra.mxu0 %v53
    %74 = vmatpush.msra.mxu0 %v51
    %75 = vmatpush.msra.mxu0 %v49
    %76 = vmatpush.msra.mxu0 %v47
    %77 = vmatpush.msra.mxu0 %v45
    %78 = vmatpush.msra.mxu0 %v43
    %79 = vmatpush.msra.mxu0 %v41
    %80 = vmatpush.msra.mxu0 %v39
    %81 = vmatpush.msra.mxu0 %v37
    %82 = vmatpush.msra.mxu0 %v35
    %83 = vmatmul.f32.gmra.mxu0 %v31
    %v84 = vpop.f32.mrf.mxu0
    %v85 = vadd.f32 0.0, %v84
    %86 = vmatmul.f32.gmra.mxu0 %v32
    %v87 = vpop.f32.mrf.mxu0
    %v88 = vadd.f32 0.0, %v87
    %89 = vmatmul.f32.gmra.mxu0 %v33
    %v90 = vpop.f32.mrf.mxu0
    %v91 = vadd.f32 0.0, %v90
    %92 = vmatmul.f32.gmra.mxu0 %v34
    %v93 = vpop.f32.mrf.mxu0
    %v94 = vadd.f32 0.0, %v93
    %95 = vdwg.mxu0
    %96 = vmatpush.msra.mxu0 %v66
    %97 = vmatpush.msra.mxu0 %v64
    %98 = vmatpush.msra.mxu0 %v62
    %99 = vmatpush.msra.mxu0 %v60
    %100 = vmatpush.msra.mxu0 %v58
    %101 = vmatpush.msra.mxu0 %v56
    %102 = vmatpush.msra.mxu0 %v54
    %103 = vmatpush.msra.mxu0 %v52
    %104 = vmatpush.msra.mxu0 %v50
    %105 = vmatpush.msra.mxu0 %v48
    %106 = vmatpush.msra.mxu0 %v46
    %107 = vmatpush.msra.mxu0 %v44
    %108 = vmatpush.msra.mxu0 %v42
    %109 = vmatpush.msra.mxu0 %v40
    %110 = vmatpush.msra.mxu0 %v38
    %111 = vmatpush.msra.mxu0 %v36
    %112 = vmatmul.f32.gmra.mxu0 %v31
    %v113 = vpop.f32.mrf.mxu0
    %v114 = vadd.f32 0.0, %v113
    %115 = vmatmul.f32.gmra.mxu0 %v32
    %v116 = vpop.f32.mrf.mxu0
    %v117 = vadd.f32 0.0, %v116
    %118 = vmatmul.f32.gmra.mxu0 %v33
    %v119 = vpop.f32.mrf.mxu0
    %v120 = vadd.f32 0.0, %v119
    %121 = vmatmul.f32.gmra.mxu0 %v34
    %v122 = vpop.f32.mrf.mxu0
    %v123 = vadd.f32 0.0, %v122
    %124 = vdwg.mxu0
    %v125 = vmul.f32 %v31, %v31
    %v126 = vmul.f32 %v32, %v32
    %v127 = vmul.f32 %v33, %v33
    %v128 = vmul.f32 %v34, %v34
    %129 = vadd.xlane.f32.xlu0 %v125
    %v130 = vpop.xlane.xlu0 %129
    %131 = vadd.xlane.f32.xlu0 %v126
    %v132 = vpop.xlane.xlu0 %131
    %133 = vadd.xlane.f32.xlu0 %v127
    %v134 = vpop.xlane.xlu0 %133
    %135 = vadd.xlane.f32.xlu0 %v128
    %v136 = vpop.xlane.xlu0 %135
    %v137 = vmul.f32 %v35, %v35
    %v138 = vmul.f32 %v36, %v36
    %v139 = vmul.f32 %v37, %v37
    %v140 = vmul.f32 %v38, %v38
    %v141 = vmul.f32 %v39, %v39
    %v142 = vmul.f32 %v40, %v40
    %v143 = vmul.f32 %v41, %v41
    %v144 = vmul.f32 %v42, %v42
    %v145 = vmul.f32 %v43, %v43
    %v146 = vmul.f32 %v44, %v44
    %v147 = vmul.f32 %v45, %v45
    %v148 = vmul.f32 %v46, %v46
    %v149 = vmul.f32 %v47, %v47
    %v150 = vmul.f32 %v48, %v48
    %v151 = vmul.f32 %v49, %v49
    %v152 = vmul.f32 %v50, %v50
    %v153 = vmul.f32 %v51, %v51
    %v154 = vmul.f32 %v52, %v52
    %v155 = vmul.f32 %v53, %v53
    %v156 = vmul.f32 %v54, %v54
    %v157 = vmul.f32 %v55, %v55
    %v158 = vmul.f32 %v56, %v56
    %v159 = vmul.f32 %v57, %v57
    %v160 = vmul.f32 %v58, %v58
    %v161 = vmul.f32 %v59, %v59
    %v162 = vmul.f32 %v60, %v60
    %v163 = vmul.f32 %v61, %v61
    %v164 = vmul.f32 %v62, %v62
    %v165 = vmul.f32 %v63, %v63
    %v166 = vmul.f32 %v64, %v64
    %v167 = vmul.f32 %v65, %v65
    %v168 = vmul.f32 %v66, %v66
    %v169 = vadd.f32 %v137, %v139
    %v170 = vadd.f32 %v169, %v141
    %v171 = vadd.f32 %v170, %v143
    %v172 = vadd.f32 %v171, %v145
    %v173 = vadd.f32 %v172, %v147
    %v174 = vadd.f32 %v173, %v149
    %v175 = vadd.f32 %v174, %v151
    %v176 = vadd.f32 %v175, %v153
    %v177 = vadd.f32 %v176, %v155
    %v178 = vadd.f32 %v177, %v157
    %v179 = vadd.f32 %v178, %v159
    %v180 = vadd.f32 %v179, %v161
    %v181 = vadd.f32 %v180, %v163
    %v182 = vadd.f32 %v181, %v165
    %v183 = vadd.f32 %v182, %v167
    %v184 = vrot.slane %v183, 4
    %v185 = vadd.f32 %v183, %v184
    %v186 = vrot.slane %v185, 2
    %v187 = vadd.f32 %v185, %v186
    %v188 = vrot.slane %v187, 1
    %v189 = vadd.f32 %v187, %v188
    %v190 = vadd.f32 %v138, %v140
    %v191 = vadd.f32 %v190, %v142
    %v192 = vadd.f32 %v191, %v144
    %v193 = vadd.f32 %v192, %v146
    %v194 = vadd.f32 %v193, %v148
    %v195 = vadd.f32 %v194, %v150
    %v196 = vadd.f32 %v195, %v152
    %v197 = vadd.f32 %v196, %v154
    %v198 = vadd.f32 %v197, %v156
    %v199 = vadd.f32 %v198, %v158
    %v200 = vadd.f32 %v199, %v160
    %v201 = vadd.f32 %v200, %v162
    %v202 = vadd.f32 %v201, %v164
    %v203 = vadd.f32 %v202, %v166
    %v204 = vadd.f32 %v203, %v168
    %v205 = vrot.slane %v204, 4
    %v206 = vadd.f32 %v204, %v205
    %v207 = vrot.slane %v206, 2
    %v208 = vadd.f32 %v206, %v207
    %v209 = vrot.slane %v208, 1
    %v210 = vadd.f32 %v208, %v209
    %v211 = vld [vmem:[%s2] sm:$0xff]
    %v212 = vld [vmem:[%s2 + $0x8] sm:$0xff]
    %v213 = vld [vmem:[%s2 + $0x10] sm:$0xff]
    %v214 = vld [vmem:[%s2 + $0x18] sm:$0xff]
    %v215 = vrsqrt.pop %v130
    %v216 = vmul.f32 %v215, %v130
    %v217 = vmul.f32 %v216, %v215
    %v218 = vmul.f32 0.5, %v217
    %v219 = vsub.f32 1.5, %v218
    %v220 = vmul.f32 %v215, %v219
    %v221 = vmul.f32 %v130, %v220
    %vm222 = vcmp.eq.f32.partialorder %v130, inf
    %v223 = vsel %vm222, %v130, %v221
    %vm224 = vcmp.eq.f32.partialorder %v130, 0.0
    %v225 = vand.u32 %v130, 2147483648
    %v226 = vsel %vm224, %v225, %v223
    %v227 = vrsqrt.pop %v132
    %v228 = vmul.f32 %v227, %v132
    %v229 = vmul.f32 %v228, %v227
    %v230 = vmul.f32 0.5, %v229
    %v231 = vsub.f32 1.5, %v230
    %v232 = vmul.f32 %v227, %v231
    %v233 = vmul.f32 %v132, %v232
    %vm234 = vcmp.eq.f32.partialorder %v132, inf
    %v235 = vsel %vm234, %v132, %v233
    %vm236 = vcmp.eq.f32.partialorder %v132, 0.0
    %v237 = vand.u32 %v132, 2147483648
    %v238 = vsel %vm236, %v237, %v235
    %v239 = vrsqrt.pop %v134
    %v240 = vmul.f32 %v239, %v134
    %v241 = vmul.f32 %v240, %v239
    %v242 = vmul.f32 0.5, %v241
    %v243 = vsub.f32 1.5, %v242
    %v244 = vmul.f32 %v239, %v243
    %v245 = vmul.f32 %v134, %v244
    %vm246 = vcmp.eq.f32.partialorder %v134, inf
    %v247 = vsel %vm246, %v134, %v245
    %vm248 = vcmp.eq.f32.partialorder %v134, 0.0
    %v249 = vand.u32 %v134, 2147483648
    %v250 = vsel %vm248, %v249, %v247
    %v251 = vrsqrt.pop %v136
    %v252 = vmul.f32 %v251, %v136
    %v253 = vmul.f32 %v252, %v251
    %v254 = vmul.f32 0.5, %v253
    %v255 = vsub.f32 1.5, %v254
    %v256 = vmul.f32 %v251, %v255
    %v257 = vmul.f32 %v136, %v256
    %vm258 = vcmp.eq.f32.partialorder %v136, inf
    %v259 = vsel %vm258, %v136, %v257
    %vm260 = vcmp.eq.f32.partialorder %v136, 0.0
    %v261 = vand.u32 %v136, 2147483648
    %v262 = vsel %vm260, %v261, %v259
    %v263 = vmax.f32 %v226, 1e-12
    %v264 = vmax.f32 %v238, 1e-12
    %v265 = vmax.f32 %v250, 1e-12
    %v266 = vmax.f32 %v262, 1e-12
    %v267 = vrsqrt.pop %v189
    %v268 = vmul.f32 %v267, %v189
    %v269 = vmul.f32 %v268, %v267
    %v270 = vmul.f32 0.5, %v269
    %v271 = vsub.f32 1.5, %v270
    %v272 = vmul.f32 %v267, %v271
    %v273 = vmul.f32 %v189, %v272
    %vm274 = vcmp.eq.f32.partialorder %v189, inf
    %v275 = vsel %vm274, %v189, %v273
    %vm276 = vcmp.eq.f32.partialorder %v189, 0.0
    %v277 = vand.u32 %v189, 2147483648
    %v278 = vsel %vm276, %v277, %v275
    %v279 = vrsqrt.pop %v210
    %v280 = vmul.f32 %v279, %v210
    %v281 = vmul.f32 %v280, %v279
    %v282 = vmul.f32 0.5, %v281
    %v283 = vsub.f32 1.5, %v282
    %v284 = vmul.f32 %v279, %v283
    %v285 = vmul.f32 %v210, %v284
    %vm286 = vcmp.eq.f32.partialorder %v210, inf
    %v287 = vsel %vm286, %v210, %v285
    %vm288 = vcmp.eq.f32.partialorder %v210, 0.0
    %v289 = vand.u32 %v210, 2147483648
    %v290 = vsel %vm288, %v289, %v287
    %v291 = vmax.f32 %v278, 1e-12
    %v292 = vmax.f32 %v290, 1e-12
    %v293 = vmul.f32 %v263, %v291
    %v294 = vmul.f32 %v263, %v292
    %v295 = vmul.f32 %v264, %v291
    %v296 = vmul.f32 %v264, %v292
    %v297 = vmul.f32 %v265, %v291
    %v298 = vmul.f32 %v265, %v292
    %v299 = vmul.f32 %v266, %v291
    %v300 = vmul.f32 %v266, %v292
    %v301 = vrcp.pop %v293
    %v302 = vmul.f32 %v293, %v301
    %v303 = vsub.f32 1.0, %v302
    %v304 = vmul.f32 %v301, %v303
    %v305 = vadd.f32 %v301, %v304
    %vm306 = vweird.f32 %v293
    %vm307 = vweird.f32 %v301
    %vm308 = vmor %vm306, %vm307
    %v309 = vsel %vm308, %v301, %v305
    %v310 = vand.u32 2147483647, %v293
    %vm311 = vcmp.eq.f32.partialorder %v310, 8.507059e+37
    %v312 = vand.u32 %v293, 2147483648
    %v313 = vor.u32 1.1754944e-38, %v312
    %v314 = vsel %vm311, %v313, %v309
    %v315 = vmul.f32 %v85, %v314
    %v316 = vrcp.pop %v294
    %v317 = vmul.f32 %v294, %v316
    %v318 = vsub.f32 1.0, %v317
    %v319 = vmul.f32 %v316, %v318
    %v320 = vadd.f32 %v316, %v319
    %vm321 = vweird.f32 %v294
    %vm322 = vweird.f32 %v316
    %vm323 = vmor %vm321, %vm322
    %v324 = vsel %vm323, %v316, %v320
    %v325 = vand.u32 2147483647, %v294
    %vm326 = vcmp.eq.f32.partialorder %v325, 8.507059e+37
    %v327 = vand.u32 %v294, 2147483648
    %v328 = vor.u32 1.1754944e-38, %v327
    %v329 = vsel %vm326, %v328, %v324
    %v330 = vmul.f32 %v114, %v329
    %v331 = vrcp.pop %v295
    %v332 = vmul.f32 %v295, %v331
    %v333 = vsub.f32 1.0, %v332
    %v334 = vmul.f32 %v331, %v333
    %v335 = vadd.f32 %v331, %v334
    %vm336 = vweird.f32 %v295
    %vm337 = vweird.f32 %v331
    %vm338 = vmor %vm336, %vm337
    %v339 = vsel %vm338, %v331, %v335
    %v340 = vand.u32 2147483647, %v295
    %vm341 = vcmp.eq.f32.partialorder %v340, 8.507059e+37
    %v342 = vand.u32 %v295, 2147483648
    %v343 = vor.u32 1.1754944e-38, %v342
    %v344 = vsel %vm341, %v343, %v339
    %v345 = vmul.f32 %v88, %v344
    %v346 = vrcp.pop %v296
    %v347 = vmul.f32 %v296, %v346
    %v348 = vsub.f32 1.0, %v347
    %v349 = vmul.f32 %v346, %v348
    %v350 = vadd.f32 %v346, %v349
    %vm351 = vweird.f32 %v296
    %vm352 = vweird.f32 %v346
    %vm353 = vmor %vm351, %vm352
    %v354 = vsel %vm353, %v346, %v350
    %v355 = vand.u32 2147483647, %v296
    %vm356 = vcmp.eq.f32.partialorder %v355, 8.507059e+37
    %v357 = vand.u32 %v296, 2147483648
    %v358 = vor.u32 1.1754944e-38, %v357
    %v359 = vsel %vm356, %v358, %v354
    %v360 = vmul.f32 %v117, %v359
    %v361 = vrcp.pop %v297
    %v362 = vmul.f32 %v297, %v361
    %v363 = vsub.f32 1.0, %v362
    %v364 = vmul.f32 %v361, %v363
    %v365 = vadd.f32 %v361, %v364
    %vm366 = vweird.f32 %v297
    %vm367 = vweird.f32 %v361
    %vm368 = vmor %vm366, %vm367
    %v369 = vsel %vm368, %v361, %v365
    %v370 = vand.u32 2147483647, %v297
    %vm371 = vcmp.eq.f32.partialorder %v370, 8.507059e+37
    %v372 = vand.u32 %v297, 2147483648
    %v373 = vor.u32 1.1754944e-38, %v372
    %v374 = vsel %vm371, %v373, %v369
    %v375 = vmul.f32 %v91, %v374
    %v376 = vrcp.pop %v298
    %v377 = vmul.f32 %v298, %v376
    %v378 = vsub.f32 1.0, %v377
    %v379 = vmul.f32 %v376, %v378
    %v380 = vadd.f32 %v376, %v379
    %vm381 = vweird.f32 %v298
    %vm382 = vweird.f32 %v376
    %vm383 = vmor %vm381, %vm382
    %v384 = vsel %vm383, %v376, %v380
    %v385 = vand.u32 2147483647, %v298
    %vm386 = vcmp.eq.f32.partialorder %v385, 8.507059e+37
    %v387 = vand.u32 %v298, 2147483648
    %v388 = vor.u32 1.1754944e-38, %v387
    %v389 = vsel %vm386, %v388, %v384
    %v390 = vmul.f32 %v120, %v389
    %v391 = vrcp.pop %v299
    %v392 = vmul.f32 %v299, %v391
    %v393 = vsub.f32 1.0, %v392
    %v394 = vmul.f32 %v391, %v393
    %v395 = vadd.f32 %v391, %v394
    %vm396 = vweird.f32 %v299
    %vm397 = vweird.f32 %v391
    %vm398 = vmor %vm396, %vm397
    %v399 = vsel %vm398, %v391, %v395
    %v400 = vand.u32 2147483647, %v299
    %vm401 = vcmp.eq.f32.partialorder %v400, 8.507059e+37
    %v402 = vand.u32 %v299, 2147483648
    %v403 = vor.u32 1.1754944e-38, %v402
    %v404 = vsel %vm401, %v403, %v399
    %v405 = vmul.f32 %v94, %v404
    %v406 = vrcp.pop %v300
    %v407 = vmul.f32 %v300, %v406
    %v408 = vsub.f32 1.0, %v407
    %v409 = vmul.f32 %v406, %v408
    %v410 = vadd.f32 %v406, %v409
    %vm411 = vweird.f32 %v300
    %vm412 = vweird.f32 %v406
    %vm413 = vmor %vm411, %vm412
    %v414 = vsel %vm413, %v406, %v410
    %v415 = vand.u32 2147483647, %v300
    %vm416 = vcmp.eq.f32.partialorder %v415, 8.507059e+37
    %v417 = vand.u32 %v300, 2147483648
    %v418 = vor.u32 1.1754944e-38, %v417
    %v419 = vsel %vm416, %v418, %v414
    %v420 = vmul.f32 %v123, %v419
    %v421 = vlaneseq
    %v422 = vand.u32 %v421, 127
    %v423 = vadd.s32 %v422, 128
    %424 = vset.pattern.permute.xlu0 0
    %425 = vperm.xlu0 %424, %v211
    %v426 = vpop.permute.xlu0 %425
    %427 = vset.pattern.permute.xlu0 0
    %428 = vperm.xlu0 %427, %v212
    %v429 = vpop.permute.xlu0 %428
    %430 = vset.pattern.permute.xlu0 0
    %431 = vperm.xlu0 %430, %v213
    %v432 = vpop.permute.xlu0 %431
    %433 = vset.pattern.permute.xlu0 0
    %434 = vperm.xlu0 %433, %v214
    %v435 = vpop.permute.xlu0 %434
    %vm436 = vcmp.eq.s32.totalorder %v422, %v426
    %vm437 = vcmp.eq.s32.totalorder %v423, %v426
    %vm438 = vcmp.eq.s32.totalorder %v422, %v429
    %vm439 = vcmp.eq.s32.totalorder %v423, %v429
    %vm440 = vcmp.eq.s32.totalorder %v422, %v432
    %vm441 = vcmp.eq.s32.totalorder %v423, %v432
    %vm442 = vcmp.eq.s32.totalorder %v422, %v435
    %vm443 = vcmp.eq.s32.totalorder %v423, %v435
    %v444 = vsel %vm436, %v315, 0.0
    %v445 = vsel %vm437, %v330, 0.0
    %v446 = vsel %vm438, %v345, 0.0
    %v447 = vsel %vm439, %v360, 0.0
    %v448 = vsel %vm440, %v375, 0.0
    %v449 = vsel %vm441, %v390, 0.0
    %v450 = vsel %vm442, %v405, 0.0
    %v451 = vsel %vm443, %v420, 0.0
    %v452 = vadd.f32 %v444, %v445
    %453 = vadd.xlane.f32.xlu0 %v452
    %v454 = vpop.xlane.xlu0 %453
    %v455 = vadd.f32 %v446, %v447
    %456 = vadd.xlane.f32.xlu0 %v455
    %v457 = vpop.xlane.xlu0 %456
    %v458 = vadd.f32 %v448, %v449
    %459 = vadd.xlane.f32.xlu0 %v458
    %v460 = vpop.xlane.xlu0 %459
    %v461 = vadd.f32 %v450, %v451
    %462 = vadd.xlane.f32.xlu0 %v461
    %v463 = vpop.xlane.xlu0 %462
    %v464 = vsub.f32 %v454, 0.35
    %v465 = vsub.f32 %v457, 0.35
    %v466 = vsub.f32 %v460, 0.35
    %v467 = vsub.f32 %v463, 0.35
    %vm468 = vcmp.gt.f32.partialorder %v315, %v464
    %vm469 = vcmp.gt.f32.partialorder %v330, %v464
    %vm470 = vcmp.gt.f32.partialorder %v345, %v465
    %vm471 = vcmp.gt.f32.partialorder %v360, %v465
    %vm472 = vcmp.gt.f32.partialorder %v375, %v466
    %vm473 = vcmp.gt.f32.partialorder %v390, %v466
    %vm474 = vcmp.gt.f32.partialorder %v405, %v467
    %vm475 = vcmp.gt.f32.partialorder %v420, %v467
    %vm476 = vcmp.gt.f32.partialorder %v454, 0.35
    %vm477 = vcmp.gt.f32.partialorder %v457, 0.35
    %vm478 = vcmp.gt.f32.partialorder %v460, 0.35
    %vm479 = vcmp.gt.f32.partialorder %v463, 0.35
    %v480 = vsel %vm476, %v464, %v454
    %v481 = vsel %vm477, %v465, %v457
    %v482 = vsel %vm478, %v466, %v460
    %v483 = vsel %vm479, %v467, %v463
    %v484 = vmul.f32 %v315, 1.12
    %v485 = vmul.f32 %v330, 1.12
    %v486 = vmul.f32 %v345, 1.12
    %v487 = vmul.f32 %v360, 1.12
    %v488 = vmul.f32 %v375, 1.12
    %v489 = vmul.f32 %v390, 1.12
    %v490 = vmul.f32 %v405, 1.12
    %v491 = vmul.f32 %v420, 1.12
    %v492 = vadd.f32 %v484, 0.12
    %v493 = vadd.f32 %v485, 0.12
    %v494 = vadd.f32 %v486, 0.12
    %v495 = vadd.f32 %v487, 0.12
    %v496 = vadd.f32 %v488, 0.12
    %v497 = vadd.f32 %v489, 0.12
    %v498 = vadd.f32 %v490, 0.12
    %v499 = vadd.f32 %v491, 0.12
    %v500 = vsel %vm468, %v492, %v315
    %v501 = vsel %vm469, %v493, %v330
    %v502 = vsel %vm470, %v494, %v345
    %v503 = vsel %vm471, %v495, %v360
    %v504 = vsel %vm472, %v496, %v375
    %v505 = vsel %vm473, %v497, %v390
    %v506 = vsel %vm474, %v498, %v405
    %v507 = vsel %vm475, %v499, %v420
    %v508 = vsel %vm436, %v480, %v500
    %v509 = vsel %vm437, %v480, %v501
    %v510 = vsel %vm438, %v481, %v502
    %v511 = vsel %vm439, %v481, %v503
    %v512 = vsel %vm440, %v482, %v504
    %v513 = vsel %vm441, %v482, %v505
    %v514 = vsel %vm442, %v483, %v506
    %v515 = vsel %vm443, %v483, %v507
    %v516 = vmul.f32 %v508, 32.0
    %v517 = vmul.f32 %v509, 32.0
    %v518 = vmul.f32 %v510, 32.0
    %v519 = vmul.f32 %v511, 32.0
    %v520 = vmul.f32 %v512, 32.0
    %v521 = vmul.f32 %v513, 32.0
    %v522 = vmul.f32 %v514, 32.0
    %v523 = vmul.f32 %v515, 32.0
    %524 = vst [vmem:[#allocation5] sm:$0xff] %v516
    %525 = vst [vmem:[#allocation5 + $0x8] sm:$0xff] %v517
    %526 = vst [vmem:[#allocation5 + $0x10] sm:$0xff] %v518
    %527 = vst [vmem:[#allocation5 + $0x18] sm:$0xff] %v519
    %528 = vst [vmem:[#allocation5 + $0x20] sm:$0xff] %v520
    %529 = vst [vmem:[#allocation5 + $0x28] sm:$0xff] %v521
    %530 = vst [vmem:[#allocation5 + $0x30] sm:$0xff] %v522
    %531 = vst [vmem:[#allocation5 + $0x38] sm:$0xff] %v523
    // Predicated region
    $region18: #{tpu_custom_call.1} parent=1 // pred_check
      _
    $region19: #{tpu_custom_call.1} parent=1 // pred_check_branch
      %533 = sbr.rel (0) target = $region21
    $region20: #{tpu_custom_call.1} parent=1 // pred_region
      %535 = vsyncadd [#allocation4], 0
      %s536 = sshll.u32 [#allocation5], 4
      %s537 = int_to_ptr.vmem [resolvable:$true] %s536
      %s538 = sshll.u32 %s3, 4
      %s539 = int_to_ptr.hbm [resolvable:$true] %s538
      %544 = dma.vmem_to_hbm [thread:$0]  %s537, 1024, %s539, [#allocation4], 256, 256, 16
    $region21: #{tpu_custom_call.1} parent=1 // pred_fallthru
      _
    // Predicated region
    $region22: #{tpu_custom_call.1} parent=1 // pred_check
      _
    $region23: #{tpu_custom_call.1} parent=1 // pred_check_branch
      %546 = sbr.rel (0) target = $region25
    $region24: #{tpu_custom_call.1} parent=1 // pred_region
      %548 = dma.done [#allocation4], 1024
    $region25: #{tpu_custom_call.1} parent=1 // pred_fallthru
      _
    %549 = vsyncpa [#allocation3], 1
    %550 = vsyncpa [#allocation4], 1

</llo_original>
